<compile_context>
chip_gen: v5e
topology: v5e:2x2
jax: 0.10.0
libtpu: 0.0.40
codegen_flags: <defaults>
</compile_context>

<pallas_src>
import math

import jax
import jax.numpy as jnp
from jax import lax
from jax.experimental import pallas as pl
from jax.experimental.pallas import tpu as pltpu

F_FEAT = 1443
F_PAD = 1536                      # next multiple of 128 >= 1443
R = 128                           # gathered rows per grid step (768 KiB/step in f32)
VMEM_LIMIT = 32 * 1024 * 1024     # fits v5e/v6e/v7x scoped/physical VMEM comfortably


def _round_up(v, m):
    return ((v + m - 1) // m) * m


def _cdiv(a, b):
    return (a + b - 1) // b


# ---------------- kernel 1: layer-0 score matvec over contiguous rows -------------------------
def _score_matvec_kernel(x_ref, p_ref, r_ref):
    # (tn, F_PAD) @ (F_PAD, 1) on the MXU; tanh / score scaling happens in the wrapper.
    r_ref[...] = jnp.dot(x_ref[...], p_ref[...], preferred_element_type=jnp.float32)


def score_matvec_tiled(x0, p_hat, n):
    np_rows = x0.shape[0]
    tn = min(1024, np_rows)                      # 1024-row blocks amortize per-step overhead
    raw = pl.pallas_call(
        _score_matvec_kernel,
        out_shape=jax.ShapeDtypeStruct((np_rows, 1), jnp.float32),
        grid=(pl.cdiv(np_rows, tn),),
        in_specs=[pl.BlockSpec((tn, F_PAD), lambda i: (i, 0)),
                  pl.BlockSpec((F_PAD, 1), lambda i: (0, 0))],
        out_specs=pl.BlockSpec((tn, 1), lambda i: (i, 0)),
        compiler_params=pltpu.CompilerParams(
            dimension_semantics=("parallel",),
            vmem_limit_bytes=VMEM_LIMIT),
    )(x0, p_hat)
    return raw[:n, 0]                            # padded rows (score of zero-rows) discarded here


# ---------------- shared manual-DMA row gather helpers -----------------------------------------
def _issue_rows(idx_ref, x_hbm, buf, sem, base, slot):
    # Issue R per-row HBM->VMEM copies for the step whose first row index is idx_ref[base].
    for r in range(R):
        row = idx_ref[base + r]
        pltpu.make_async_copy(
            x_hbm.at[pl.ds(row, 1)],             # (1, F_PAD) row of x0 in HBM
            buf.at[slot, pl.ds(r, 1)],           # (1, F_PAD) row slot in VMEM
            sem.at[slot],
        ).start()


def _wait_rows(buf, sem, slot):
    # One wait per issued row copy (robust regardless of semaphore increment semantics).
    for r in range(R):
        pltpu.make_async_copy(
            buf.at[slot, pl.ds(r, 1)],
            buf.at[slot, pl.ds(r, 1)],
            sem.at[slot],
        ).wait()


def _split_layout(k):
    # Lay k rows out as (nsplit, nsteps, R); nsplit=2 feeds v7x's two TensorCores.
    nsteps_total = max(1, _cdiv(k, R))
    nsplit = 2 if nsteps_total >= 2 else 1
    nsteps = _cdiv(nsteps_total, nsplit)
    return nsplit, nsteps, nsplit * nsteps * R


# ---------------- kernel 2: fused row-gather + score matvec (layers >= 1) ---------------------
def _gather_matvec_kernel(idx_ref, x_hbm, p_ref, out_ref, buf, sem):
    c = pl.program_id(0)                         # split (parallel)
    j = pl.program_id(1)                         # step within split (arbitrary, double-buffered)
    nsteps = pl.num_programs(1)
    slot = lax.rem(j, 2)

    @pl.when(j == 0)
    def _():                                     # prime slot 0 with this split's first R rows
        _issue_rows(idx_ref, x_hbm, buf, sem, c * nsteps * R, 0)

    @pl.when(j + 1 < nsteps)
    def _():                                     # prefetch next step into the other slot
        _issue_rows(idx_ref, x_hbm, buf, sem, (c * nsteps + j + 1) * R, 1 - slot)

    _wait_rows(buf, sem, slot)
    out_ref[...] = jnp.dot(buf[slot], p_ref[...], preferred_element_type=jnp.float32)  # (R, 1)


def gather_matvec(x0, idx, p_hat):
    k = idx.shape[0]
    nsplit, nsteps, k_pad = _split_layout(k)
    idx_pad = jnp.pad(idx, (0, k_pad - k))       # pad rows gather row 0; scores discarded below
    raw = pl.pallas_call(
        _gather_matvec_kernel,
        out_shape=jax.ShapeDtypeStruct((k_pad, 1), jnp.float32),
        grid_spec=pltpu.PrefetchScalarGridSpec(
            num_scalar_prefetch=1,
            grid=(nsplit, nsteps),
            in_specs=[pl.BlockSpec(memory_space=pl.ANY),                         # x0 stays in HBM
                      pl.BlockSpec((F_PAD, 1), lambda c, j, idx_r: (0, 0))],     # weight (resident)
            out_specs=pl.BlockSpec((R, 1), lambda c, j, idx_r: (c * nsteps + j, 0)),
            scratch_shapes=[pltpu.VMEM((2, R, F_PAD), jnp.float32),
                            pltpu.SemaphoreType.DMA((2,))]),
        compiler_params=pltpu.CompilerParams(
            dimension_semantics=("parallel", "arbitrary"),
            vmem_limit_bytes=VMEM_LIMIT),
    )(idx_pad, x0, p_hat)
    return raw[:k, 0]


# ---------------- kernel 3: fused final gather + weighted global mean pool --------------------
def _gather_mean_kernel(idx_ref, x_hbm, scale_ref, out_ref, buf, sem):
    c = pl.program_id(0)
    j = pl.program_id(1)
    nsteps = pl.num_programs(1)
    slot = lax.rem(j, 2)

    @pl.when(j == 0)
    def _():
        out_ref[...] = jnp.zeros_like(out_ref)
        _issue_rows(idx_ref, x_hbm, buf, sem, c * nsteps * R, 0)

    @pl.when(j + 1 < nsteps)
    def _():
        _issue_rows(idx_ref, x_hbm, buf, sem, (c * nsteps + j + 1) * R, 1 - slot)

    _wait_rows(buf, sem, slot)
    w = scale_ref[pl.ds(j, 1), :]                                        # (1, R) composed scales
    # Weighted accumulation as one MXU matmul per step (review item): (1,R) @ (R,F_PAD).
    out_ref[0:1, :] += jnp.dot(w, buf[slot], preferred_element_type=jnp.float32)


def gather_weighted_mean(x0, idx, scale):
    k = idx.shape[0]
    nsplit, nsteps, k_pad = _split_layout(k)
    idx_pad = jnp.pad(idx, (0, k_pad - k))                 # pad rows gather row 0 ...
    scale_pad = jnp.pad(scale, (0, k_pad - k)).reshape(nsplit, nsteps, R)  # ... with scale 0
    partial = pl.pallas_call(
        _gather_mean_kernel,
        out_shape=jax.ShapeDtypeStruct((nsplit, 8, F_PAD), jnp.float32),
        grid_spec=pltpu.PrefetchScalarGridSpec(
            num_scalar_prefetch=1,
            grid=(nsplit, nsteps),
            in_specs=[pl.BlockSpec(memory_space=pl.ANY),
                      pl.BlockSpec((None, nsteps, R), lambda c, j, idx_r: (c, 0, 0))],
            out_specs=pl.BlockSpec((None, 8, F_PAD), lambda c, j, idx_r: (c, 0, 0)),
            scratch_shapes=[pltpu.VMEM((2, R, F_PAD), jnp.float32),
                            pltpu.SemaphoreType.DMA((2,))]),
        compiler_params=pltpu.CompilerParams(
            dimension_semantics=("parallel", "arbitrary"),
            vmem_limit_bytes=VMEM_LIMIT),
    )(idx_pad, x0, scale_pad)
    # Row 0 of each split block holds that split's weighted sum; combine partial sums here.
    return jnp.sum(partial[:, 0, :], axis=0, keepdims=True)              # (1, F_PAD)


# ---------------- forward pass (mirrors HierarchicalPoolingLayer.forward) ---------------------
def _prep_weight(p):
    # Pre-normalize the TopKPooling weight (hoisted out of the kernels) and pad to F_PAD.
    pv = p.astype(jnp.float32).reshape(-1)
    pv = pv * lax.rsqrt(jnp.sum(pv * pv))
    return jnp.pad(pv, (0, F_PAD - F_FEAT)).reshape(F_PAD, 1)


def hierarchical_pooling_forward(x, edge_index, edge_weight, weights, pool_ratios):
    assert x.shape[1] == F_FEAT, "Feature dimension of x must be 1443"
    assert edge_index.shape[0] == 2, "edge_index must have 2 rows"
    if edge_weight.shape[0] != edge_index.shape[1]:
        raise ValueError(
            "Edge weight and edge index dimensions do not match. "
            "Edge weight size: {}, Edge index size: {}.".format(
                edge_weight.shape[0], edge_index.shape[1]))

    n = x.shape[0]
    np_rows = _round_up(n, 8)
    # Single HBM copy of the node features, rows padded to a sublane multiple, features to 1536.
    x0 = jnp.pad(x.astype(jnp.float32), ((0, np_rows - n), (0, F_PAD - F_FEAT)))

    idx = jnp.arange(n, dtype=jnp.int32)     # composed row indices into x0
    scale = jnp.ones((n,), jnp.float32)      # composed per-row score products
    k = n
    for li, (p, ratio) in enumerate(zip(weights, pool_ratios)):
        p_hat = _prep_weight(p)
        if li == 0:
            raw = score_matvec_tiled(x0, p_hat, n)     # contiguous, row-tiled
        else:
            raw = gather_matvec(x0, idx, p_hat)        # manual-DMA gather via prefetched idx
        s = jnp.tanh(scale * raw)                      # TopKPooling score of the current nodes
        k_new = min(int(math.ceil(ratio * k)), k)      # static k per layer
        _, perm = lax.top_k(s, k_new)                  # selection (descending score)
        idx = idx[perm]                                # compose gather indices
        scale = (scale * s)[perm]                      # compose gating scales
        k = k_new
        # TODO(synk): filter_adj (edge_index / edge_weight remapping) yields dynamic shapes and
        # does not affect the returned data.x / data.edge_index; not re-implemented here.

    wsum = gather_weighted_mean(x0, idx, scale)        # (1, F_PAD) weighted sum over kept nodes
    pooled = (wsum / jnp.float32(k))[:, :F_FEAT]       # global_mean_pool (batch is all zeros)
    # data.x = pooled_x; edge_index / edge_attr on `data` are left unchanged by the module.
    return pooled, edge_index, edge_weight


# ---------------- pure-JAX reference for a correctness sanity check ---------------------------
def _reference(x, weights, pool_ratios):
    xr = x.astype(jnp.float32)
    n = xr.shape[0]
    for p, ratio in zip(weights, pool_ratios):
        pv = p.astype(jnp.float32).reshape(-1)
        s = jnp.tanh((xr @ pv) / jnp.sqrt(jnp.sum(pv * pv)))
        k = min(int(math.ceil(ratio * n)), n)
        _, perm = lax.top_k(s, k)
        xr = xr[perm] * s[perm][:, None]
        n = k
    return jnp.mean(xr, axis=0, keepdims=True)


if __name__ == "__main__":
    key = jax.random.PRNGKey(0)
    kx, ke, kw_attr, kw = jax.random.split(key, 4)

    num_nodes, num_edges = 16, 32
    num_layers = 2
    pool_ratios = [0.5, 0.5]

    x = jax.random.normal(kx, (num_nodes, F_FEAT), jnp.float32)
    edge_index = jax.random.randint(ke, (2, num_edges), 0, num_nodes, jnp.int32)
    edge_attr = jax.random.uniform(kw_attr, (num_edges,), jnp.float32)

    # Deterministic TopKPooling weights: uniform(-1/sqrt(F), 1/sqrt(F)), shape (1, 1443) each.
    bound = 1.0 / math.sqrt(F_FEAT)
    wkeys = jax.random.split(kw, num_layers)
    weights = [jax.random.uniform(k, (1, F_FEAT), jnp.float32, -bound, bound) for k in wkeys]

    pooled_x, ei, ew = hierarchical_pooling_forward(x, edge_index, edge_attr, weights, pool_ratios)
    jax.block_until_ready(pooled_x)
    assert pooled_x.shape == (1, F_FEAT)
    assert bool(jnp.all(jnp.isfinite(pooled_x)))

    ref = _reference(x, weights, pool_ratios)
    assert bool(jnp.allclose(pooled_x, ref, atol=2e-3, rtol=2e-3)), "mismatch vs pure-JAX reference"
    print("KERNEL_OK")
</pallas_src>

<mosaic_0001>
module attributes {stable_mosaic.version = 11 : i64} {
  func.func @_score_matvec_kernel(%arg0: i32, %arg1: memref<16x1536xf32, #tpu.memory_space<vmem>>, %arg2: memref<1536x1xf32, #tpu.memory_space<vmem>>, %arg3: memref<16x1xf32, #tpu.memory_space<vmem>>) attributes {dimension_semantics = [#tpu.dimension_semantics<parallel>], iteration_bounds = array<i64: 1>, scalar_prefetch = 0 : i64, scratch_operands = 0 : i64, tpu.core_type = #tpu.core_type<tc>, window_params = [{transform_indices = @transform_0, window_bounds = array<i64: 16, 1536>}, {pipeline_mode = #tpu.pipeline_mode<synchronous>, transform_indices = @transform_1, window_bounds = array<i64: 1536, 1>}, {transform_indices = @transform_2, window_bounds = array<i64: 16, 1>}]} {
    %c0 = arith.constant 0 : index
    %c0_0 = arith.constant 0 : index
    %0 = vector.load %arg1[%c0, %c0_0] : memref<16x1536xf32, #tpu.memory_space<vmem>>, vector<16x1536xf32>
    %c0_1 = arith.constant 0 : index
    %c0_2 = arith.constant 0 : index
    %1 = vector.load %arg2[%c0_1, %c0_2] : memref<1536x1xf32, #tpu.memory_space<vmem>>, vector<1536x1xf32>
    %cst = arith.constant dense<0.000000e+00> : vector<16x1xf32>
    %2 = tpu.matmul %0, %1, %cst {dimension_numbers = #tpu.dot_dimension_numbers<[1], [0], [0], [1], [0, 0, 1, 1], [], []>} : vector<16x1536xf32>, vector<1536x1xf32>, vector<16x1xf32> -> vector<16x1xf32>
    %c0_3 = arith.constant 0 : index
    %c0_4 = arith.constant 0 : index
    %3 = vector.load %arg3[%c0_3, %c0_4] : memref<16x1xf32, #tpu.memory_space<vmem>>, vector<16x1xf32>
    tpu.vector_store %arg3[%c0_3, %c0_4], %2 {strides = array<i32>} : memref<16x1xf32, #tpu.memory_space<vmem>>, vector<16x1xf32>,
    return
  }
  func.func @transform_0(%arg0: i32) -> (i32, i32) {
    %c0_i32 = arith.constant 0 : i32
    %c0_i32_0 = arith.constant 0 : i32
    return %arg0, %c0_i32 : i32, i32
  }
  func.func @transform_1(%arg0: i32) -> (i32, i32) {
    %c0_i32 = arith.constant 0 : i32
    %c0_i32_0 = arith.constant 0 : i32
    %c0_i32_1 = arith.constant 0 : i32
    return %c0_i32, %c0_i32_0 : i32, i32
  }
  func.func @transform_2(%arg0: i32) -> (i32, i32) {
    %c0_i32 = arith.constant 0 : i32
    %c0_i32_0 = arith.constant 0 : i32
    return %arg0, %c0_i32 : i32, i32
  }
}

</mosaic_0001>

<llo_original>
// kernel: tpu_custom_call.1
$region0: #{tpu_custom_call.1}
  #allocation0 [shape = 'u32[]', space=smem, size = 0x4, offset = 0x4, fixed_abs, tag = 'smem constant byte address 0x4 - core index']
  #allocation1 [shape = 'u32[72,128]{1,0:T(1,128)}', space=vmem, size = 0x9000, scoped, tag = 'internal scratch']
  %s0 = inlined_call_operand.vmem [shape: f32[16,1536], index: 0, kind: input, shape index: {}]
  %s1 = inlined_call_operand.vmem [shape: f32[1536,1], index: 1, kind: input, shape index: {}]
  %s2 = inlined_call_operand.vmem [shape: f32[16,1], index: 2, kind: output, shape index: {}]
  %s3 = sld [smem:[#allocation0]]
  $region18: #{tpu_custom_call.1} parent=0
    _
  %s5 = ssub.s32 1, %s3
  %s6 = scalar_select 0, %s5, %s3
  // Predicated region
  $region2: #{tpu_custom_call.1} parent=0 // pred_check
    _
  $region3: #{tpu_custom_call.1} parent=0 // pred_check_branch
    %8 = sbr.rel (0) target = $region5
  $region4: #{tpu_custom_call.1} parent=0 // pred_region
    _
  $region5: #{tpu_custom_call.1} parent=0 // pred_fallthru
    _
  // Predicated region
  $region6: #{tpu_custom_call.1} parent=0 // pred_check
    _
  $region7: #{tpu_custom_call.1} parent=0 // pred_check_branch
    %10 = sbr.rel (0) target = $region9
  $region8: #{tpu_custom_call.1} parent=0 // pred_region
    _
  $region9: #{tpu_custom_call.1} parent=0 // pred_fallthru
    _
  %v11 = vld [vmem:[%s0] sm:$0xff]
  %v12 = vld [vmem:[%s0 + $0x8] sm:$0xff]
  %v13 = vld [vmem:[%s0 + $0x10] sm:$0xff]
  %v14 = vld [vmem:[%s0 + $0x18] sm:$0xff]
  %v15 = vld [vmem:[%s0 + $0x20] sm:$0xff]
  %v16 = vld [vmem:[%s0 + $0x28] sm:$0xff]
  %v17 = vld [vmem:[%s0 + $0x30] sm:$0xff]
  %v18 = vld [vmem:[%s0 + $0x38] sm:$0xff]
  %v19 = vld [vmem:[%s0 + $0x40] sm:$0xff]
  %v20 = vld [vmem:[%s0 + $0x48] sm:$0xff]
  %v21 = vld [vmem:[%s0 + $0x50] sm:$0xff]
  %v22 = vld [vmem:[%s0 + $0x58] sm:$0xff]
  %v23 = vld [vmem:[%s0 + $0x60] sm:$0xff]
  %v24 = vld [vmem:[%s0 + $0x68] sm:$0xff]
  %v25 = vld [vmem:[%s0 + $0x70] sm:$0xff]
  %v26 = vld [vmem:[%s0 + $0x78] sm:$0xff]
  %v27 = vld [vmem:[%s0 + $0x80] sm:$0xff]
  %v28 = vld [vmem:[%s0 + $0x88] sm:$0xff]
  %v29 = vld [vmem:[%s0 + $0x90] sm:$0xff]
  %v30 = vld [vmem:[%s0 + $0x98] sm:$0xff]
  %v31 = vld [vmem:[%s0 + $0xa0] sm:$0xff]
  %v32 = vld [vmem:[%s0 + $0xa8] sm:$0xff]
  %v33 = vld [vmem:[%s0 + $0xb0] sm:$0xff]
  %v34 = vld [vmem:[%s0 + $0xb8] sm:$0xff]
  %v35 = vld [vmem:[%s1] sm:$0xff]
  %v36 = vld [vmem:[%s1 + $0x8] sm:$0xff]
  %v37 = vld [vmem:[%s1 + $0x10] sm:$0xff]
  %v38 = vld [vmem:[%s1 + $0x18] sm:$0xff]
  %v39 = vld [vmem:[%s1 + $0x20] sm:$0xff]
  %v40 = vld [vmem:[%s1 + $0x28] sm:$0xff]
  %v41 = vld [vmem:[%s1 + $0x30] sm:$0xff]
  %v42 = vld [vmem:[%s1 + $0x38] sm:$0xff]
  %v43 = vld [vmem:[%s1 + $0x40] sm:$0xff]
  %v44 = vld [vmem:[%s1 + $0x48] sm:$0xff]
  %v45 = vld [vmem:[%s1 + $0x50] sm:$0xff]
  %v46 = vld [vmem:[%s1 + $0x58] sm:$0xff]
  %v47 = vld [vmem:[%s1 + $0x60] sm:$0xff]
  %v48 = vld [vmem:[%s1 + $0x68] sm:$0xff]
  %v49 = vld [vmem:[%s1 + $0x70] sm:$0xff]
  %v50 = vld [vmem:[%s1 + $0x78] sm:$0xff]
  %v51 = vld [vmem:[%s1 + $0x80] sm:$0xff]
  %v52 = vld [vmem:[%s1 + $0x88] sm:$0xff]
  %v53 = vld [vmem:[%s1 + $0x90] sm:$0xff]
  %v54 = vld [vmem:[%s1 + $0x98] sm:$0xff]
  %v55 = vld [vmem:[%s1 + $0xa0] sm:$0xff]
  %v56 = vld [vmem:[%s1 + $0xa8] sm:$0xff]
  %v57 = vld [vmem:[%s1 + $0xb0] sm:$0xff]
  %v58 = vld [vmem:[%s1 + $0xb8] sm:$0xff]
  %v59 = vld [vmem:[%s1 + $0xc0] sm:$0xff]
  %v60 = vld [vmem:[%s1 + $0xc8] sm:$0xff]
  %v61 = vld [vmem:[%s1 + $0xd0] sm:$0xff]
  %v62 = vld [vmem:[%s1 + $0xd8] sm:$0xff]
  %v63 = vld [vmem:[%s1 + $0xe0] sm:$0xff]
  %v64 = vld [vmem:[%s1 + $0xe8] sm:$0xff]
  %v65 = vld [vmem:[%s1 + $0xf0] sm:$0xff]
  %v66 = vld [vmem:[%s1 + $0xf8] sm:$0xff]
  %v67 = vld [vmem:[%s1 + $0x100] sm:$0xff]
  %v68 = vld [vmem:[%s1 + $0x108] sm:$0xff]
  %v69 = vld [vmem:[%s1 + $0x110] sm:$0xff]
  %v70 = vld [vmem:[%s1 + $0x118] sm:$0xff]
  %v71 = vld [vmem:[%s1 + $0x120] sm:$0xff]
  %v72 = vld [vmem:[%s1 + $0x128] sm:$0xff]
  %v73 = vld [vmem:[%s1 + $0x130] sm:$0xff]
  %v74 = vld [vmem:[%s1 + $0x138] sm:$0xff]
  %v75 = vld [vmem:[%s1 + $0x140] sm:$0xff]
  %v76 = vld [vmem:[%s1 + $0x148] sm:$0xff]
  %v77 = vld [vmem:[%s1 + $0x150] sm:$0xff]
  %v78 = vld [vmem:[%s1 + $0x158] sm:$0xff]
  %v79 = vld [vmem:[%s1 + $0x160] sm:$0xff]
  %v80 = vld [vmem:[%s1 + $0x168] sm:$0xff]
  %v81 = vld [vmem:[%s1 + $0x170] sm:$0xff]
  %v82 = vld [vmem:[%s1 + $0x178] sm:$0xff]
  %v83 = vld [vmem:[%s1 + $0x180] sm:$0xff]
  %v84 = vld [vmem:[%s1 + $0x188] sm:$0xff]
  %v85 = vld [vmem:[%s1 + $0x190] sm:$0xff]
  %v86 = vld [vmem:[%s1 + $0x198] sm:$0xff]
  %v87 = vld [vmem:[%s1 + $0x1a0] sm:$0xff]
  %v88 = vld [vmem:[%s1 + $0x1a8] sm:$0xff]
  %v89 = vld [vmem:[%s1 + $0x1b0] sm:$0xff]
  %v90 = vld [vmem:[%s1 + $0x1b8] sm:$0xff]
  %v91 = vld [vmem:[%s1 + $0x1c0] sm:$0xff]
  %v92 = vld [vmem:[%s1 + $0x1c8] sm:$0xff]
  %v93 = vld [vmem:[%s1 + $0x1d0] sm:$0xff]
  %v94 = vld [vmem:[%s1 + $0x1d8] sm:$0xff]
  %v95 = vld [vmem:[%s1 + $0x1e0] sm:$0xff]
  %v96 = vld [vmem:[%s1 + $0x1e8] sm:$0xff]
  %v97 = vld [vmem:[%s1 + $0x1f0] sm:$0xff]
  %v98 = vld [vmem:[%s1 + $0x1f8] sm:$0xff]
  %v99 = vld [vmem:[%s1 + $0x200] sm:$0xff]
  %v100 = vld [vmem:[%s1 + $0x208] sm:$0xff]
  %v101 = vld [vmem:[%s1 + $0x210] sm:$0xff]
  %v102 = vld [vmem:[%s1 + $0x218] sm:$0xff]
  %v103 = vld [vmem:[%s1 + $0x220] sm:$0xff]
  %v104 = vld [vmem:[%s1 + $0x228] sm:$0xff]
  %v105 = vld [vmem:[%s1 + $0x230] sm:$0xff]
  %v106 = vld [vmem:[%s1 + $0x238] sm:$0xff]
  %v107 = vld [vmem:[%s1 + $0x240] sm:$0xff]
  %v108 = vld [vmem:[%s1 + $0x248] sm:$0xff]
  %v109 = vld [vmem:[%s1 + $0x250] sm:$0xff]
  %v110 = vld [vmem:[%s1 + $0x258] sm:$0xff]
  %v111 = vld [vmem:[%s1 + $0x260] sm:$0xff]
  %v112 = vld [vmem:[%s1 + $0x268] sm:$0xff]
  %v113 = vld [vmem:[%s1 + $0x270] sm:$0xff]
  %v114 = vld [vmem:[%s1 + $0x278] sm:$0xff]
  %v115 = vld [vmem:[%s1 + $0x280] sm:$0xff]
  %v116 = vld [vmem:[%s1 + $0x288] sm:$0xff]
  %v117 = vld [vmem:[%s1 + $0x290] sm:$0xff]
  %v118 = vld [vmem:[%s1 + $0x298] sm:$0xff]
  %v119 = vld [vmem:[%s1 + $0x2a0] sm:$0xff]
  %v120 = vld [vmem:[%s1 + $0x2a8] sm:$0xff]
  %v121 = vld [vmem:[%s1 + $0x2b0] sm:$0xff]
  %v122 = vld [vmem:[%s1 + $0x2b8] sm:$0xff]
  %v123 = vld [vmem:[%s1 + $0x2c0] sm:$0xff]
  %v124 = vld [vmem:[%s1 + $0x2c8] sm:$0xff]
  %v125 = vld [vmem:[%s1 + $0x2d0] sm:$0xff]
  %v126 = vld [vmem:[%s1 + $0x2d8] sm:$0xff]
  %v127 = vld [vmem:[%s1 + $0x2e0] sm:$0xff]
  %v128 = vld [vmem:[%s1 + $0x2e8] sm:$0xff]
  %v129 = vld [vmem:[%s1 + $0x2f0] sm:$0xff]
  %v130 = vld [vmem:[%s1 + $0x2f8] sm:$0xff]
  %v131 = vld [vmem:[%s1 + $0x300] sm:$0xff]
  %v132 = vld [vmem:[%s1 + $0x308] sm:$0xff]
  %v133 = vld [vmem:[%s1 + $0x310] sm:$0xff]
  %v134 = vld [vmem:[%s1 + $0x318] sm:$0xff]
  %v135 = vld [vmem:[%s1 + $0x320] sm:$0xff]
  %v136 = vld [vmem:[%s1 + $0x328] sm:$0xff]
  %v137 = vld [vmem:[%s1 + $0x330] sm:$0xff]
  %v138 = vld [vmem:[%s1 + $0x338] sm:$0xff]
  %v139 = vld [vmem:[%s1 + $0x340] sm:$0xff]
  %v140 = vld [vmem:[%s1 + $0x348] sm:$0xff]
  %v141 = vld [vmem:[%s1 + $0x350] sm:$0xff]
  %v142 = vld [vmem:[%s1 + $0x358] sm:$0xff]
  %v143 = vld [vmem:[%s1 + $0x360] sm:$0xff]
  %v144 = vld [vmem:[%s1 + $0x368] sm:$0xff]
  %v145 = vld [vmem:[%s1 + $0x370] sm:$0xff]
  %v146 = vld [vmem:[%s1 + $0x378] sm:$0xff]
  %v147 = vld [vmem:[%s1 + $0x380] sm:$0xff]
  %v148 = vld [vmem:[%s1 + $0x388] sm:$0xff]
  %v149 = vld [vmem:[%s1 + $0x390] sm:$0xff]
  %v150 = vld [vmem:[%s1 + $0x398] sm:$0xff]
  %v151 = vld [vmem:[%s1 + $0x3a0] sm:$0xff]
  %v152 = vld [vmem:[%s1 + $0x3a8] sm:$0xff]
  %v153 = vld [vmem:[%s1 + $0x3b0] sm:$0xff]
  %v154 = vld [vmem:[%s1 + $0x3b8] sm:$0xff]
  %v155 = vld [vmem:[%s1 + $0x3c0] sm:$0xff]
  %v156 = vld [vmem:[%s1 + $0x3c8] sm:$0xff]
  %v157 = vld [vmem:[%s1 + $0x3d0] sm:$0xff]
  %v158 = vld [vmem:[%s1 + $0x3d8] sm:$0xff]
  %v159 = vld [vmem:[%s1 + $0x3e0] sm:$0xff]
  %v160 = vld [vmem:[%s1 + $0x3e8] sm:$0xff]
  %v161 = vld [vmem:[%s1 + $0x3f0] sm:$0xff]
  %v162 = vld [vmem:[%s1 + $0x3f8] sm:$0xff]
  %v163 = vld [vmem:[%s1 + $0x400] sm:$0xff]
  %v164 = vld [vmem:[%s1 + $0x408] sm:$0xff]
  %v165 = vld [vmem:[%s1 + $0x410] sm:$0xff]
  %v166 = vld [vmem:[%s1 + $0x418] sm:$0xff]
  %v167 = vld [vmem:[%s1 + $0x420] sm:$0xff]
  %v168 = vld [vmem:[%s1 + $0x428] sm:$0xff]
  %v169 = vld [vmem:[%s1 + $0x430] sm:$0xff]
  %v170 = vld [vmem:[%s1 + $0x438] sm:$0xff]
  %v171 = vld [vmem:[%s1 + $0x440] sm:$0xff]
  %v172 = vld [vmem:[%s1 + $0x448] sm:$0xff]
  %v173 = vld [vmem:[%s1 + $0x450] sm:$0xff]
  %v174 = vld [vmem:[%s1 + $0x458] sm:$0xff]
  %v175 = vld [vmem:[%s1 + $0x460] sm:$0xff]
  %v176 = vld [vmem:[%s1 + $0x468] sm:$0xff]
  %v177 = vld [vmem:[%s1 + $0x470] sm:$0xff]
  %v178 = vld [vmem:[%s1 + $0x478] sm:$0xff]
  %v179 = vld [vmem:[%s1 + $0x480] sm:$0xff]
  %v180 = vld [vmem:[%s1 + $0x488] sm:$0xff]
  %v181 = vld [vmem:[%s1 + $0x490] sm:$0xff]
  %v182 = vld [vmem:[%s1 + $0x498] sm:$0xff]
  %v183 = vld [vmem:[%s1 + $0x4a0] sm:$0xff]
  %v184 = vld [vmem:[%s1 + $0x4a8] sm:$0xff]
  %v185 = vld [vmem:[%s1 + $0x4b0] sm:$0xff]
  %v186 = vld [vmem:[%s1 + $0x4b8] sm:$0xff]
  %v187 = vld [vmem:[%s1 + $0x4c0] sm:$0xff]
  %v188 = vld [vmem:[%s1 + $0x4c8] sm:$0xff]
  %v189 = vld [vmem:[%s1 + $0x4d0] sm:$0xff]
  %v190 = vld [vmem:[%s1 + $0x4d8] sm:$0xff]
  %v191 = vld [vmem:[%s1 + $0x4e0] sm:$0xff]
  %v192 = vld [vmem:[%s1 + $0x4e8] sm:$0xff]
  %v193 = vld [vmem:[%s1 + $0x4f0] sm:$0xff]
  %v194 = vld [vmem:[%s1 + $0x4f8] sm:$0xff]
  %v195 = vld [vmem:[%s1 + $0x500] sm:$0xff]
  %v196 = vld [vmem:[%s1 + $0x508] sm:$0xff]
  %v197 = vld [vmem:[%s1 + $0x510] sm:$0xff]
  %v198 = vld [vmem:[%s1 + $0x518] sm:$0xff]
  %v199 = vld [vmem:[%s1 + $0x520] sm:$0xff]
  %v200 = vld [vmem:[%s1 + $0x528] sm:$0xff]
  %v201 = vld [vmem:[%s1 + $0x530] sm:$0xff]
  %v202 = vld [vmem:[%s1 + $0x538] sm:$0xff]
  %v203 = vld [vmem:[%s1 + $0x540] sm:$0xff]
  %v204 = vld [vmem:[%s1 + $0x548] sm:$0xff]
  %v205 = vld [vmem:[%s1 + $0x550] sm:$0xff]
  %v206 = vld [vmem:[%s1 + $0x558] sm:$0xff]
  %v207 = vld [vmem:[%s1 + $0x560] sm:$0xff]
  %v208 = vld [vmem:[%s1 + $0x568] sm:$0xff]
  %v209 = vld [vmem:[%s1 + $0x570] sm:$0xff]
  %v210 = vld [vmem:[%s1 + $0x578] sm:$0xff]
  %v211 = vld [vmem:[%s1 + $0x580] sm:$0xff]
  %v212 = vld [vmem:[%s1 + $0x588] sm:$0xff]
  %v213 = vld [vmem:[%s1 + $0x590] sm:$0xff]
  %v214 = vld [vmem:[%s1 + $0x598] sm:$0xff]
  %v215 = vld [vmem:[%s1 + $0x5a0] sm:$0xff]
  %v216 = vld [vmem:[%s1 + $0x5a8] sm:$0xff]
  %v217 = vld [vmem:[%s1 + $0x5b0] sm:$0xff]
  %v218 = vld [vmem:[%s1 + $0x5b8] sm:$0xff]
  %v219 = vld [vmem:[%s1 + $0x5c0] sm:$0xff]
  %v220 = vld [vmem:[%s1 + $0x5c8] sm:$0xff]
  %v221 = vld [vmem:[%s1 + $0x5d0] sm:$0xff]
  %v222 = vld [vmem:[%s1 + $0x5d8] sm:$0xff]
  %v223 = vld [vmem:[%s1 + $0x5e0] sm:$0xff]
  %v224 = vld [vmem:[%s1 + $0x5e8] sm:$0xff]
  %v225 = vld [vmem:[%s1 + $0x5f0] sm:$0xff]
  %v226 = vld [vmem:[%s1 + $0x5f8] sm:$0xff]
  %227 = vmatpush.msra.mxu0 %v50
  %228 = vmatpush.msra.mxu0 %v49
  %229 = vmatpush.msra.mxu0 %v48
  %230 = vmatpush.msra.mxu0 %v47
  %231 = vmatpush.msra.mxu0 %v46
  %232 = vmatpush.msra.mxu0 %v45
  %233 = vmatpush.msra.mxu0 %v44
  %234 = vmatpush.msra.mxu0 %v43
  %235 = vmatpush.msra.mxu0 %v42
  %236 = vmatpush.msra.mxu0 %v41
  %237 = vmatpush.msra.mxu0 %v40
  %238 = vmatpush.msra.mxu0 %v39
  %239 = vmatpush.msra.mxu0 %v38
  %240 = vmatpush.msra.mxu0 %v37
  %241 = vmatpush.msra.mxu0 %v36
  %242 = vmatpush.msra.mxu0 %v35
  %243 = vmatmul.f32.gmra.mxu0 %v11
  %v244 = vpop.f32.mrf.mxu0
  %v245 = vadd.f32 0.0, %v244
  %246 = vmatmul.f32.gmra.mxu0 %v23
  %v247 = vpop.f32.mrf.mxu0
  %v248 = vadd.f32 0.0, %v247
  %249 = vdwg.mxu0
  %250 = vmatpush.msra.mxu0 %v66
  %251 = vmatpush.msra.mxu0 %v65
  %252 = vmatpush.msra.mxu0 %v64
  %253 = vmatpush.msra.mxu0 %v63
  %254 = vmatpush.msra.mxu0 %v62
  %255 = vmatpush.msra.mxu0 %v61
  %256 = vmatpush.msra.mxu0 %v60
  %257 = vmatpush.msra.mxu0 %v59
  %258 = vmatpush.msra.mxu0 %v58
  %259 = vmatpush.msra.mxu0 %v57
  %260 = vmatpush.msra.mxu0 %v56
  %261 = vmatpush.msra.mxu0 %v55
  %262 = vmatpush.msra.mxu0 %v54
  %263 = vmatpush.msra.mxu0 %v53
  %264 = vmatpush.msra.mxu0 %v52
  %265 = vmatpush.msra.mxu0 %v51
  %266 = vmatmul.f32.gmra.mxu0 %v12
  %v267 = vpop.f32.mrf.mxu0
  %v268 = vadd.f32 %v245, %v267
  %269 = vmatmul.f32.gmra.mxu0 %v24
  %v270 = vpop.f32.mrf.mxu0
  %v271 = vadd.f32 %v248, %v270
  %272 = vdwg.mxu0
  %273 = vmatpush.msra.mxu0 %v82
  %274 = vmatpush.msra.mxu0 %v81
  %275 = vmatpush.msra.mxu0 %v80
  %276 = vmatpush.msra.mxu0 %v79
  %277 = vmatpush.msra.mxu0 %v78
  %278 = vmatpush.msra.mxu0 %v77
  %279 = vmatpush.msra.mxu0 %v76
  %280 = vmatpush.msra.mxu0 %v75
  %281 = vmatpush.msra.mxu0 %v74
  %282 = vmatpush.msra.mxu0 %v73
  %283 = vmatpush.msra.mxu0 %v72
  %284 = vmatpush.msra.mxu0 %v71
  %285 = vmatpush.msra.mxu0 %v70
  %286 = vmatpush.msra.mxu0 %v69
  %287 = vmatpush.msra.mxu0 %v68
  %288 = vmatpush.msra.mxu0 %v67
  %289 = vmatmul.f32.gmra.mxu0 %v13
  %v290 = vpop.f32.mrf.mxu0
  %v291 = vadd.f32 %v268, %v290
  %292 = vmatmul.f32.gmra.mxu0 %v25
  %v293 = vpop.f32.mrf.mxu0
  %v294 = vadd.f32 %v271, %v293
  %295 = vdwg.mxu0
  %296 = vmatpush.msra.mxu0 %v98
  %297 = vmatpush.msra.mxu0 %v97
  %298 = vmatpush.msra.mxu0 %v96
  %299 = vmatpush.msra.mxu0 %v95
  %300 = vmatpush.msra.mxu0 %v94
  %301 = vmatpush.msra.mxu0 %v93
  %302 = vmatpush.msra.mxu0 %v92
  %303 = vmatpush.msra.mxu0 %v91
  %304 = vmatpush.msra.mxu0 %v90
  %305 = vmatpush.msra.mxu0 %v89
  %306 = vmatpush.msra.mxu0 %v88
  %307 = vmatpush.msra.mxu0 %v87
  %308 = vmatpush.msra.mxu0 %v86
  %309 = vmatpush.msra.mxu0 %v85
  %310 = vmatpush.msra.mxu0 %v84
  %311 = vmatpush.msra.mxu0 %v83
  %312 = vmatmul.f32.gmra.mxu0 %v14
  %v313 = vpop.f32.mrf.mxu0
  %v314 = vadd.f32 %v291, %v313
  %315 = vmatmul.f32.gmra.mxu0 %v26
  %v316 = vpop.f32.mrf.mxu0
  %v317 = vadd.f32 %v294, %v316
  %318 = vdwg.mxu0
  %319 = vmatpush.msra.mxu0 %v114
  %320 = vmatpush.msra.mxu0 %v113
  %321 = vmatpush.msra.mxu0 %v112
  %322 = vmatpush.msra.mxu0 %v111
  %323 = vmatpush.msra.mxu0 %v110
  %324 = vmatpush.msra.mxu0 %v109
  %325 = vmatpush.msra.mxu0 %v108
  %326 = vmatpush.msra.mxu0 %v107
  %327 = vmatpush.msra.mxu0 %v106
  %328 = vmatpush.msra.mxu0 %v105
  %329 = vmatpush.msra.mxu0 %v104
  %330 = vmatpush.msra.mxu0 %v103
  %331 = vmatpush.msra.mxu0 %v102
  %332 = vmatpush.msra.mxu0 %v101
  %333 = vmatpush.msra.mxu0 %v100
  %334 = vmatpush.msra.mxu0 %v99
  %335 = vmatmul.f32.gmra.mxu0 %v15
  %v336 = vpop.f32.mrf.mxu0
  %v337 = vadd.f32 %v314, %v336
  %338 = vmatmul.f32.gmra.mxu0 %v27
  %v339 = vpop.f32.mrf.mxu0
  %v340 = vadd.f32 %v317, %v339
  %341 = vdwg.mxu0
  %342 = vmatpush.msra.mxu0 %v130
  %343 = vmatpush.msra.mxu0 %v129
  %344 = vmatpush.msra.mxu0 %v128
  %345 = vmatpush.msra.mxu0 %v127
  %346 = vmatpush.msra.mxu0 %v126
  %347 = vmatpush.msra.mxu0 %v125
  %348 = vmatpush.msra.mxu0 %v124
  %349 = vmatpush.msra.mxu0 %v123
  %350 = vmatpush.msra.mxu0 %v122
  %351 = vmatpush.msra.mxu0 %v121
  %352 = vmatpush.msra.mxu0 %v120
  %353 = vmatpush.msra.mxu0 %v119
  %354 = vmatpush.msra.mxu0 %v118
  %355 = vmatpush.msra.mxu0 %v117
  %356 = vmatpush.msra.mxu0 %v116
  %357 = vmatpush.msra.mxu0 %v115
  %358 = vmatmul.f32.gmra.mxu0 %v16
  %v359 = vpop.f32.mrf.mxu0
  %v360 = vadd.f32 %v337, %v359
  %361 = vmatmul.f32.gmra.mxu0 %v28
  %v362 = vpop.f32.mrf.mxu0
  %v363 = vadd.f32 %v340, %v362
  %364 = vdwg.mxu0
  %365 = vmatpush.msra.mxu0 %v146
  %366 = vmatpush.msra.mxu0 %v145
  %367 = vmatpush.msra.mxu0 %v144
  %368 = vmatpush.msra.mxu0 %v143
  %369 = vmatpush.msra.mxu0 %v142
  %370 = vmatpush.msra.mxu0 %v141
  %371 = vmatpush.msra.mxu0 %v140
  %372 = vmatpush.msra.mxu0 %v139
  %373 = vmatpush.msra.mxu0 %v138
  %374 = vmatpush.msra.mxu0 %v137
  %375 = vmatpush.msra.mxu0 %v136
  %376 = vmatpush.msra.mxu0 %v135
  %377 = vmatpush.msra.mxu0 %v134
  %378 = vmatpush.msra.mxu0 %v133
  %379 = vmatpush.msra.mxu0 %v132
  %380 = vmatpush.msra.mxu0 %v131
  %381 = vmatmul.f32.gmra.mxu0 %v17
  %v382 = vpop.f32.mrf.mxu0
  %v383 = vadd.f32 %v360, %v382
  %384 = vmatmul.f32.gmra.mxu0 %v29
  %v385 = vpop.f32.mrf.mxu0
  %v386 = vadd.f32 %v363, %v385
  %387 = vdwg.mxu0
  %388 = vmatpush.msra.mxu0 %v162
  %389 = vmatpush.msra.mxu0 %v161
  %390 = vmatpush.msra.mxu0 %v160
  %391 = vmatpush.msra.mxu0 %v159
  %392 = vmatpush.msra.mxu0 %v158
  %393 = vmatpush.msra.mxu0 %v157
  %394 = vmatpush.msra.mxu0 %v156
  %395 = vmatpush.msra.mxu0 %v155
  %396 = vmatpush.msra.mxu0 %v154
  %397 = vmatpush.msra.mxu0 %v153
  %398 = vmatpush.msra.mxu0 %v152
  %399 = vmatpush.msra.mxu0 %v151
  %400 = vmatpush.msra.mxu0 %v150
  %401 = vmatpush.msra.mxu0 %v149
  %402 = vmatpush.msra.mxu0 %v148
  %403 = vmatpush.msra.mxu0 %v147
  %404 = vmatmul.f32.gmra.mxu0 %v18
  %v405 = vpop.f32.mrf.mxu0
  %v406 = vadd.f32 %v383, %v405
  %407 = vmatmul.f32.gmra.mxu0 %v30
  %v408 = vpop.f32.mrf.mxu0
  %v409 = vadd.f32 %v386, %v408
  %410 = vdwg.mxu0
  %411 = vmatpush.msra.mxu0 %v178
  %412 = vmatpush.msra.mxu0 %v177
  %413 = vmatpush.msra.mxu0 %v176
  %414 = vmatpush.msra.mxu0 %v175
  %415 = vmatpush.msra.mxu0 %v174
  %416 = vmatpush.msra.mxu0 %v173
  %417 = vmatpush.msra.mxu0 %v172
  %418 = vmatpush.msra.mxu0 %v171
  %419 = vmatpush.msra.mxu0 %v170
  %420 = vmatpush.msra.mxu0 %v169
  %421 = vmatpush.msra.mxu0 %v168
  %422 = vmatpush.msra.mxu0 %v167
  %423 = vmatpush.msra.mxu0 %v166
  %424 = vmatpush.msra.mxu0 %v165
  %425 = vmatpush.msra.mxu0 %v164
  %426 = vmatpush.msra.mxu0 %v163
  %427 = vmatmul.f32.gmra.mxu0 %v19
  %v428 = vpop.f32.mrf.mxu0
  %v429 = vadd.f32 %v406, %v428
  %430 = vmatmul.f32.gmra.mxu0 %v31
  %v431 = vpop.f32.mrf.mxu0
  %v432 = vadd.f32 %v409, %v431
  %433 = vdwg.mxu0
  %434 = vmatpush.msra.mxu0 %v194
  %435 = vmatpush.msra.mxu0 %v193
  %436 = vmatpush.msra.mxu0 %v192
  %437 = vmatpush.msra.mxu0 %v191
  %438 = vmatpush.msra.mxu0 %v190
  %439 = vmatpush.msra.mxu0 %v189
  %440 = vmatpush.msra.mxu0 %v188
  %441 = vmatpush.msra.mxu0 %v187
  %442 = vmatpush.msra.mxu0 %v186
  %443 = vmatpush.msra.mxu0 %v185
  %444 = vmatpush.msra.mxu0 %v184
  %445 = vmatpush.msra.mxu0 %v183
  %446 = vmatpush.msra.mxu0 %v182
  %447 = vmatpush.msra.mxu0 %v181
  %448 = vmatpush.msra.mxu0 %v180
  %449 = vmatpush.msra.mxu0 %v179
  %450 = vmatmul.f32.gmra.mxu0 %v20
  %v451 = vpop.f32.mrf.mxu0
  %v452 = vadd.f32 %v429, %v451
  %453 = vmatmul.f32.gmra.mxu0 %v32
  %v454 = vpop.f32.mrf.mxu0
  %v455 = vadd.f32 %v432, %v454
  %456 = vdwg.mxu0
  %457 = vmatpush.msra.mxu0 %v210
  %458 = vmatpush.msra.mxu0 %v209
  %459 = vmatpush.msra.mxu0 %v208
  %460 = vmatpush.msra.mxu0 %v207
  %461 = vmatpush.msra.mxu0 %v206
  %462 = vmatpush.msra.mxu0 %v205
  %463 = vmatpush.msra.mxu0 %v204
  %464 = vmatpush.msra.mxu0 %v203
  %465 = vmatpush.msra.mxu0 %v202
  %466 = vmatpush.msra.mxu0 %v201
  %467 = vmatpush.msra.mxu0 %v200
  %468 = vmatpush.msra.mxu0 %v199
  %469 = vmatpush.msra.mxu0 %v198
  %470 = vmatpush.msra.mxu0 %v197
  %471 = vmatpush.msra.mxu0 %v196
  %472 = vmatpush.msra.mxu0 %v195
  %473 = vmatmul.f32.gmra.mxu0 %v21
  %v474 = vpop.f32.mrf.mxu0
  %v475 = vadd.f32 %v452, %v474
  %476 = vmatmul.f32.gmra.mxu0 %v33
  %v477 = vpop.f32.mrf.mxu0
  %v478 = vadd.f32 %v455, %v477
  %479 = vdwg.mxu0
  %480 = vmatpush.msra.mxu0 %v226
  %481 = vmatpush.msra.mxu0 %v225
  %482 = vmatpush.msra.mxu0 %v224
  %483 = vmatpush.msra.mxu0 %v223
  %484 = vmatpush.msra.mxu0 %v222
  %485 = vmatpush.msra.mxu0 %v221
  %486 = vmatpush.msra.mxu0 %v220
  %487 = vmatpush.msra.mxu0 %v219
  %488 = vmatpush.msra.mxu0 %v218
  %489 = vmatpush.msra.mxu0 %v217
  %490 = vmatpush.msra.mxu0 %v216
  %491 = vmatpush.msra.mxu0 %v215
  %492 = vmatpush.msra.mxu0 %v214
  %493 = vmatpush.msra.mxu0 %v213
  %494 = vmatpush.msra.mxu0 %v212
  %495 = vmatpush.msra.mxu0 %v211
  %496 = vmatmul.f32.gmra.mxu0 %v22
  %v497 = vpop.f32.mrf.mxu0
  %v498 = vadd.f32 %v475, %v497
  %499 = vmatmul.f32.gmra.mxu0 %v34
  %v500 = vpop.f32.mrf.mxu0
  %v501 = vadd.f32 %v478, %v500
  %502 = vdwg.mxu0
  %vm503 = vcmask 7168
  %504 = vst.msk [vmem:[%s2] sm:$0xff] %vm503, %v498
  %505 = vst.msk [vmem:[%s2 + $0x8] sm:$0xff] %vm503, %v501
  // Predicated region
  $region10: #{tpu_custom_call.1} parent=0 // pred_check
    _
  $region11: #{tpu_custom_call.1} parent=0 // pred_check_branch
    %507 = sbr.rel (0) target = $region13
  $region12: #{tpu_custom_call.1} parent=0 // pred_region
    _
  $region13: #{tpu_custom_call.1} parent=0 // pred_fallthru
    _
  // Predicated region
  $region14: #{tpu_custom_call.1} parent=0 // pred_check
    _
  $region15: #{tpu_custom_call.1} parent=0 // pred_check_branch
    %509 = sbr.rel (0) target = $region17
  $region16: #{tpu_custom_call.1} parent=0 // pred_region
    _
  $region17: #{tpu_custom_call.1} parent=0 // pred_fallthru
    _

</llo_original>
